<compile_context>
chip_gen: v7x
topology: tpu7x:2x2x1
jax: 0.10.0
libtpu: 0.0.40
codegen_flags: <defaults>
</compile_context>

<pallas_src>
import jax
import jax.numpy as jnp
from jax.experimental import pallas as pl
from jax.experimental.pallas import tpu as pltpu


SEQ_LEN = 3
IN_CH = 5                        # one_hot_category_size
MID = 27                         # middle_size
KSIZE = (SEQ_LEN - 1) // 2 + 1   # = 2
L1 = SEQ_LEN - KSIZE + 1         # = 2  (conv1 output length)
L2 = L1 - KSIZE + 1              # = 1  (conv2 output length)
XDIM = SEQ_LEN * IN_CH           # = 15 (flattened (l, c) features per batch col)
XAUG = XDIM + 1                  # = 16 (plus ones row for bias folding)
H1DIM = L1 * MID                 # = 54 (conv1 outputs, both positions)
H1AUG = H1DIM + 1                # = 55 (plus passthrough-ones row)
H2AUG = MID + 1                  # = 28 (plus passthrough-ones row)


def _round_up(n, m):
    return ((n + m - 1) // m) * m


def qnet_kernel(x_ref, w1_ref, w2_ref, w3_ref, out_ref):
    # x_ref : (16, bt) bf16   rows 0..14 = features (l*C + c), row 15 = ones
    # w1_ref: (55, 16) bf16   conv1 (both positions) + bias col + passthrough row
    # w2_ref: (28, 55) bf16   conv2 + bias col + passthrough row
    # w3_ref: (5, 28)  bf16   fc1 + bias col
    x = x_ref[...]

    # conv1 (both output positions) + bias as ONE MXU matmul; ReLU in f32.
    h1 = jnp.maximum(
        jnp.dot(w1_ref[...], x, preferred_element_type=jnp.float32), 0.0)   # (55, bt)

    # conv2 + bias (row 54 of h1 carries the 1 that multiplies the bias column).
    h2 = jnp.maximum(
        jnp.dot(w2_ref[...], h1.astype(jnp.bfloat16),
                preferred_element_type=jnp.float32), 0.0)                    # (28, bt)

    # fc1 + bias (row 27 of h2 is the passthrough 1).
    logits = jnp.dot(w3_ref[...], h2.astype(jnp.bfloat16),
                     preferred_element_type=jnp.float32)                     # (5, bt)

    # softmax over the feature (sublane) axis; exact normalization.
    m = jnp.max(logits, axis=0, keepdims=True)
    e = jnp.exp(logits - m)
    s = jnp.sum(e, axis=0, keepdims=True)
    out_ref[...] = e / s                                                     # (5, bt)


def prepare_qnet_params(w1, b1, w2, b2, w3, b3):
    """Fold conv1's two positions and all three biases into transposed bf16 weights.

    Runs once per weight update (hoisted out of the per-call hot path).
    Shapes follow PyTorch: w1 (27,5,2), w2 (27,27,2), w3 (5,27).
    """
    # conv1 -> combined (15, 54) im2col weight; column block t = output position t.
    w1f = jnp.transpose(w1, (2, 1, 0)).reshape(KSIZE * IN_CH, MID)   # [k*C+c, o]
    w1c = jnp.zeros((XDIM, H1DIM), jnp.float32)
    for t in range(L1):
        w1c = w1c.at[t * IN_CH:(t + KSIZE) * IN_CH, t * MID:(t + 1) * MID].set(w1f)
    b1c = jnp.tile(b1, L1)                                           # b1c[t*MID+o]=b1[o]

    w1e = jnp.zeros((H1AUG, XAUG), jnp.float32)
    w1e = w1e.at[:H1DIM, :XDIM].set(w1c.T)
    w1e = w1e.at[:H1DIM, XDIM].set(b1c)
    w1e = w1e.at[H1DIM, XDIM].set(1.0)        # h1 row 54 == 1 (feeds biases downstream)

    w2f = jnp.transpose(w2, (2, 1, 0)).reshape(KSIZE * MID, MID)     # [k*MID+c, o]
    w2e = jnp.zeros((H2AUG, H1AUG), jnp.float32)
    w2e = w2e.at[:MID, :H1DIM].set(w2f.T)
    w2e = w2e.at[:MID, H1DIM].set(b2)
    w2e = w2e.at[MID, H1DIM].set(1.0)         # h2 row 27 == 1

    w3e = jnp.zeros((IN_CH, H2AUG), jnp.float32)
    w3e = w3e.at[:, :MID].set(w3)
    w3e = w3e.at[:, MID].set(b3)

    # bf16 only for MXU operands; accumulation and elementwise math stay f32.
    return (w1e.astype(jnp.bfloat16),
            w2e.astype(jnp.bfloat16),
            w3e.astype(jnp.bfloat16))


def qnet_forward(x_ncl, params, *, block_batch=8192):
    """x_ncl: (B, C=5, L=3) float32 (PyTorch NCL). Returns (B, 5) softmax probs."""
    w1e, w2e, w3e = params
    B = x_ncl.shape[0]

    # Feature-major (batch-in-lanes) input: (16, B), row index l*C + c, plus ones row.
    # TODO(synk): if the caller can hand x feature-major / bf16 directly, drop this pass.
    xT = jnp.transpose(x_ncl, (2, 1, 0)).reshape(XDIM, B)
    xa = jnp.concatenate([xT, jnp.ones((1, B), x_ncl.dtype)], axis=0)   # (16, B)
    xa = xa.astype(jnp.bfloat16)

    # Batch tile on the lane axis (multiple of 128). A (16,bt) bf16 tile is 32*bt bytes
    # and the (5->8,bt) f32 output tile 32*bt bytes, so even bt=8192 double-buffered is
    # ~1 MiB -- far below the 32 MiB scoped VMEM default on all generations (incl. v7x).
    bt = max(128, min(_round_up(block_batch, 128), _round_up(B, 128)))
    steps = -(-B // bt)
    # Keep the grid length even when >1 so "parallel" splits evenly over v7x's two TCs.
    if steps > 1 and steps % 2 == 1:
        steps += 1
    Bp = steps * bt
    if Bp != B:
        xa = jnp.pad(xa, ((0, 0), (0, Bp - B)))

    const = lambda shape: pl.BlockSpec(shape, lambda i: (0, 0))   # resident weights

    out = pl.pallas_call(
        qnet_kernel,
        out_shape=jax.ShapeDtypeStruct((IN_CH, Bp), jnp.float32),
        grid=(steps,),
        in_specs=[
            pl.BlockSpec((XAUG, bt), lambda i: (0, i)),           # x tile (batch in lanes)
            const((H1AUG, XAUG)),                                 # w1e
            const((H2AUG, H1AUG)),                                # w2e
            const((IN_CH, H2AUG)),                                # w3e
        ],
        out_specs=pl.BlockSpec((IN_CH, bt), lambda i: (0, i)),    # lane-dense output
        compiler_params=pltpu.CompilerParams(
            dimension_semantics=("parallel",)),
    )(xa, w1e, w2e, w3e)

    return out[:, :B].T                                           # (B, 5)


def ref_forward(x_ncl, w1, b1, w2, b2, w3, b3):
    """Pure-JAX f32 reference mirroring the PyTorch forward."""
    h1 = jnp.stack(
        [jnp.einsum('bck,ock->bo', x_ncl[:, :, t:t + KSIZE], w1) for t in range(L1)],
        axis=-1) + b1[None, :, None]
    h1 = jnp.maximum(h1, 0.0)                                      # (B, 27, 2)
    h2 = jnp.einsum('bck,ock->bo', h1, w2) + b2                    # (B, 27)
    h2 = jnp.maximum(h2, 0.0)
    logits = h2 @ w3.T + b3                                        # (B, 5)
    return jax.nn.softmax(logits, axis=1)


if __name__ == "__main__":
    key = jax.random.PRNGKey(0)
    kx, k1, k2, k3, k4, k5, k6 = jax.random.split(key, 7)

    B = 2
    x = jax.random.normal(kx, (B, IN_CH, SEQ_LEN), dtype=jnp.float32)  # NCL, like PyTorch

    # Deterministic synthetic parameters (PyTorch Conv1d/Linear shapes).
    w1 = jax.random.normal(k1, (MID, IN_CH, KSIZE), dtype=jnp.float32) * 0.2
    b1 = jax.random.normal(k2, (MID,), dtype=jnp.float32) * 0.1
    w2 = jax.random.normal(k3, (MID, MID, KSIZE), dtype=jnp.float32) * 0.1
    b2 = jax.random.normal(k4, (MID,), dtype=jnp.float32) * 0.1
    w3 = jax.random.normal(k5, (IN_CH, MID), dtype=jnp.float32) * 0.2
    b3 = jax.random.normal(k6, (IN_CH,), dtype=jnp.float32) * 0.1

    params = prepare_qnet_params(w1, b1, w2, b2, w3, b3)   # once per weight update
    out = jax.block_until_ready(qnet_forward(x, params))

    ref = ref_forward(x, w1, b1, w2, b2, w3, b3)
    assert out.shape == (B, IN_CH)
    # bf16 MXU operands -> relaxed elementwise tolerance vs the f32 reference.
    assert jnp.allclose(out, ref, atol=3e-2, rtol=3e-2), (out, ref)
    # Exact softmax normalization (plain division, no approx reciprocal).
    assert jnp.allclose(jnp.sum(out, axis=1), 1.0, atol=1e-4)

    print("KERNEL_OK")
</pallas_src>

<mosaic_0001>
module attributes {stable_mosaic.version = 11 : i64} {
  func.func @qnet_kernel(%arg0: i32, %arg1: memref<16x128xbf16, #tpu.memory_space<vmem>>, %arg2: memref<55x16xbf16, #tpu.memory_space<vmem>>, %arg3: memref<28x55xbf16, #tpu.memory_space<vmem>>, %arg4: memref<5x28xbf16, #tpu.memory_space<vmem>>, %arg5: memref<5x128xf32, #tpu.memory_space<vmem>>) attributes {dimension_semantics = [#tpu.dimension_semantics<parallel>], iteration_bounds = array<i64: 1>, scalar_prefetch = 0 : i64, scratch_operands = 0 : i64, tpu.core_type = #tpu.core_type<tc>, window_params = [{transform_indices = @transform_0, window_bounds = array<i64: 16, 128>}, {pipeline_mode = #tpu.pipeline_mode<synchronous>, transform_indices = @transform_1, window_bounds = array<i64: 55, 16>}, {pipeline_mode = #tpu.pipeline_mode<synchronous>, transform_indices = @transform_2, window_bounds = array<i64: 28, 55>}, {pipeline_mode = #tpu.pipeline_mode<synchronous>, transform_indices = @transform_3, window_bounds = array<i64: 5, 28>}, {transform_indices = @transform_4, window_bounds = array<i64: 5, 128>}]} {
    %c0 = arith.constant 0 : index
    %c0_0 = arith.constant 0 : index
    %0 = vector.load %arg1[%c0, %c0_0] : memref<16x128xbf16, #tpu.memory_space<vmem>>, vector<16x128xbf16>
    %c0_1 = arith.constant 0 : index
    %c0_2 = arith.constant 0 : index
    %1 = vector.load %arg2[%c0_1, %c0_2] : memref<55x16xbf16, #tpu.memory_space<vmem>>, vector<55x16xbf16>
    %cst = arith.constant dense<0.000000e+00> : vector<55x128xf32>
    %2 = tpu.matmul %1, %0, %cst {dimension_numbers = #tpu.dot_dimension_numbers<[1], [0], [0], [1], [0, 0, 1, 1], [], []>} : vector<55x16xbf16>, vector<16x128xbf16>, vector<55x128xf32> -> vector<55x128xf32>
    %cst_3 = arith.constant 0.000000e+00 : f32
    %3 = vector.broadcast %cst_3 : f32 to vector<55x128xf32>
    %4 = arith.maximumf %2, %3 : vector<55x128xf32>
    %c0_4 = arith.constant 0 : index
    %c0_5 = arith.constant 0 : index
    %5 = vector.load %arg3[%c0_4, %c0_5] : memref<28x55xbf16, #tpu.memory_space<vmem>>, vector<28x55xbf16>
    %6 = arith.truncf %4 : vector<55x128xf32> to vector<55x128xbf16>
    %cst_6 = arith.constant dense<0.000000e+00> : vector<28x128xf32>
    %7 = tpu.matmul %5, %6, %cst_6 {dimension_numbers = #tpu.dot_dimension_numbers<[1], [0], [0], [1], [0, 0, 1, 1], [], []>} : vector<28x55xbf16>, vector<55x128xbf16>, vector<28x128xf32> -> vector<28x128xf32>
    %cst_7 = arith.constant 0.000000e+00 : f32
    %8 = vector.broadcast %cst_7 : f32 to vector<28x128xf32>
    %9 = arith.maximumf %7, %8 : vector<28x128xf32>
    %c0_8 = arith.constant 0 : index
    %c0_9 = arith.constant 0 : index
    %10 = vector.load %arg4[%c0_8, %c0_9] : memref<5x28xbf16, #tpu.memory_space<vmem>>, vector<5x28xbf16>
    %11 = arith.truncf %9 : vector<28x128xf32> to vector<28x128xbf16>
    %cst_10 = arith.constant dense<0.000000e+00> : vector<5x128xf32>
    %12 = tpu.matmul %10, %11, %cst_10 {dimension_numbers = #tpu.dot_dimension_numbers<[1], [0], [0], [1], [0, 0, 1, 1], [], []>} : vector<5x28xbf16>, vector<28x128xbf16>, vector<5x128xf32> -> vector<5x128xf32>
    %cst_11 = arith.constant dense<0xFF800000> : vector<128xf32>
    %13 = vector.multi_reduction <maximumf>, %12, %cst_11 [0] : vector<5x128xf32> to vector<128xf32>
    %14 = vector.shape_cast %13 : vector<128xf32> to vector<1x128xf32>
    %15 = vector.broadcast %14 : vector<1x128xf32> to vector<5x128xf32>
    %16 = arith.subf %12, %15 : vector<5x128xf32>
    %17 = math.exp %16 : vector<5x128xf32>
    %cst_12 = arith.constant dense<0.000000e+00> : vector<128xf32>
    %18 = vector.multi_reduction <add>, %17, %cst_12 [0] : vector<5x128xf32> to vector<128xf32>
    %19 = vector.shape_cast %18 : vector<128xf32> to vector<1x128xf32>
    %20 = vector.broadcast %19 : vector<1x128xf32> to vector<5x128xf32>
    %21 = arith.divf %17, %20 : vector<5x128xf32>
    %c0_13 = arith.constant 0 : index
    %c0_14 = arith.constant 0 : index
    %22 = vector.load %arg5[%c0_13, %c0_14] : memref<5x128xf32, #tpu.memory_space<vmem>>, vector<5x128xf32>
    tpu.vector_store %arg5[%c0_13, %c0_14], %21 {strides = array<i32>} : memref<5x128xf32, #tpu.memory_space<vmem>>, vector<5x128xf32>,
    return
  }
  func.func @transform_0(%arg0: i32) -> (i32, i32) {
    %c0_i32 = arith.constant 0 : i32
    %c0_i32_0 = arith.constant 0 : i32
    return %c0_i32, %arg0 : i32, i32
  }
  func.func @transform_1(%arg0: i32) -> (i32, i32) {
    %c0_i32 = arith.constant 0 : i32
    %c0_i32_0 = arith.constant 0 : i32
    %c0_i32_1 = arith.constant 0 : i32
    return %c0_i32, %c0_i32_0 : i32, i32
  }
  func.func @transform_2(%arg0: i32) -> (i32, i32) {
    %c0_i32 = arith.constant 0 : i32
    %c0_i32_0 = arith.constant 0 : i32
    %c0_i32_1 = arith.constant 0 : i32
    return %c0_i32, %c0_i32_0 : i32, i32
  }
  func.func @transform_3(%arg0: i32) -> (i32, i32) {
    %c0_i32 = arith.constant 0 : i32
    %c0_i32_0 = arith.constant 0 : i32
    %c0_i32_1 = arith.constant 0 : i32
    return %c0_i32, %c0_i32_0 : i32, i32
  }
  func.func @transform_4(%arg0: i32) -> (i32, i32) {
    %c0_i32 = arith.constant 0 : i32
    %c0_i32_0 = arith.constant 0 : i32
    return %c0_i32, %arg0 : i32, i32
  }
}

</mosaic_0001>

<llo_original>
// kernel: tpu_custom_call.1
$region0: #{tpu_custom_call.1}
  #allocation0 [shape = 'u32[]', space=smem, size = 0x4, offset = 0x4, fixed_abs, tag = 'smem constant byte address 0x4 - core index']
  #allocation1 [shape = 'u32[144,128]{1,0:T(1,128)}', space=vmem, size = 0x12000, scoped, tag = 'internal scratch']
  %s0 = inlined_call_operand.vmem [shape: bf16[16,128], index: 0, kind: input, shape index: {}]
  %s1 = inlined_call_operand.vmem [shape: bf16[55,16], index: 1, kind: input, shape index: {}]
  %s2 = inlined_call_operand.vmem [shape: bf16[28,55], index: 2, kind: input, shape index: {}]
  %s3 = inlined_call_operand.vmem [shape: bf16[5,28], index: 3, kind: input, shape index: {}]
  %s4 = inlined_call_operand.hbm [shape: f32[5,128], index: 4, kind: output, shape index: {}]
  %s5 = sld [smem:[#allocation0]]
  $region26: #{tpu_custom_call.1} parent=0
    _
  %s7 = ssub.s32 1, %s5
  %s8 = scalar_select 0, %s7, %s5
  $region1: #{tpu_custom_call.1} parent=0
    #allocation2 [shape = 'u8[4096]{0}', space=vmem, size = 0x1000, scoped, tag = 'output window, operand 0, single buffered']
    #allocation3 [shape = 's32[1]{0}', space=sflag, size = 0x4, scoped, tag = 'scoped memory for tpu_custom_call.1']
    %9 = vsyncpa [#allocation3], 0
    // Predicated region
    $region2: #{tpu_custom_call.1} parent=1 // pred_check
      _
    $region3: #{tpu_custom_call.1} parent=1 // pred_check_branch
      %11 = sbr.rel (0) target = $region5
    $region4: #{tpu_custom_call.1} parent=1 // pred_region
      _
    $region5: #{tpu_custom_call.1} parent=1 // pred_fallthru
      _
    // Predicated region
    $region6: #{tpu_custom_call.1} parent=1 // pred_check
      _
    $region7: #{tpu_custom_call.1} parent=1 // pred_check_branch
      %13 = sbr.rel (0) target = $region9
    $region8: #{tpu_custom_call.1} parent=1 // pred_region
      _
    $region9: #{tpu_custom_call.1} parent=1 // pred_fallthru
      _
    // Predicated region
    $region10: #{tpu_custom_call.1} parent=1 // pred_check
      _
    $region11: #{tpu_custom_call.1} parent=1 // pred_check_branch
      %15 = sbr.rel (0) target = $region13
    $region12: #{tpu_custom_call.1} parent=1 // pred_region
      _
    $region13: #{tpu_custom_call.1} parent=1 // pred_fallthru
      _
    // Predicated region
    $region14: #{tpu_custom_call.1} parent=1 // pred_check
      _
    $region15: #{tpu_custom_call.1} parent=1 // pred_check_branch
      %17 = sbr.rel (0) target = $region17
    $region16: #{tpu_custom_call.1} parent=1 // pred_region
      _
    $region17: #{tpu_custom_call.1} parent=1 // pred_fallthru
      _
    %v19 = vld [vmem:[%s0] sm:$0xf]
    %v20 = vld [vmem:[%s0 + $0x4] sm:$0xf]
    %v21 = vld [vmem:[%s1] sm:$0xf]
    %v22 = vld [vmem:[%s1 + $0x4] sm:$0xf]
    %v23 = vld [vmem:[%s1 + $0x8] sm:$0xf]
    %v24 = vld [vmem:[%s1 + $0xc] sm:$0xf]
    %v25 = vld [vmem:[%s1 + $0x10] sm:$0xf]
    %v26 = vld [vmem:[%s1 + $0x14] sm:$0xf]
    %v27 = vld [vmem:[%s1 + $0x18] sm:$0xf]
    %v35 = vunpack.c.l.b16 %v21
    %v36 = vunpack.c.l.b16 %v22
    %v37 = vunpack.c.l.b16 %v23
    %v38 = vunpack.c.l.b16 %v24
    %v39 = vunpack.c.l.b16 %v25
    %v40 = vunpack.c.l.b16 %v26
    %v41 = vunpack.c.l.b16 %v27
    %v42 = vpack.c.b16 %v36, %v35
    %v43 = vpack.c.b16 %v38, %v37
    %v44 = vpack.c.b16 %v40, %v39
    %v45 = vpack.c.b16 %v41, %v41
    %v48 = vunpack.c.l.b16 %v19
    %v49 = vunpack.c.l.b16 %v20
    %v50 = vpack.c.b16 %v49, %v48
    %vm52 = vcmask 130048
    %v54 = vsel %vm52, %v42, 0
    %v57 = vsel %vm52, %v43, 0
    %v60 = vsel %vm52, %v44, 0
    %v63 = vsel %vm52, %v45, 0
    %65 = vmatprep.subr.bf16.mxu0 0
    %66 = vmatpush1.bf16.msra.mxu0 %v50
    %67 = vmatprep.subr.bf16.mxu0 0
    %68 = vmatpush1.bf16.msra.mxu0 0
    %69 = vmatprep.subr.bf16.mxu0 0
    %70 = vmatpush1.bf16.msra.mxu0 0
    %71 = vmatprep.subr.bf16.mxu0 0
    %72 = vmatpush1.bf16.msra.mxu0 0
    %73 = vmatprep.subr.bf16.mxu0 0
    %74 = vmatpush1.bf16.msra.mxu0 0
    %75 = vmatprep.subr.bf16.mxu0 0
    %76 = vmatpush1.bf16.msra.mxu0 0
    %77 = vmatprep.subr.bf16.mxu0 0
    %78 = vmatpush1.bf16.msra.mxu0 0
    %79 = vmatprep.subr.bf16.mxu0 0
    %80 = vmatpush1.bf16.msra.mxu0 0
    %81 = vmatprep.subr.bf16.mxu0 0
    %82 = vmatpush1.bf16.msra.mxu0 0
    %83 = vmatprep.subr.bf16.mxu0 0
    %84 = vmatpush1.bf16.msra.mxu0 0
    %85 = vmatprep.subr.bf16.mxu0 0
    %86 = vmatpush1.bf16.msra.mxu0 0
    %87 = vmatprep.subr.bf16.mxu0 0
    %88 = vmatpush1.bf16.msra.mxu0 0
    %89 = vmatprep.subr.bf16.mxu0 0
    %90 = vmatpush1.bf16.msra.mxu0 0
    %91 = vmatprep.subr.bf16.mxu0 0
    %92 = vmatpush1.bf16.msra.mxu0 0
    %93 = vmatprep.subr.bf16.mxu0 0
    %94 = vmatpush1.bf16.msra.mxu0 0
    %95 = vmatprep.subr.bf16.mxu0 0
    %96 = vmatpush1.bf16.msra.mxu0 0
    %97 = vmatprep.mubr.bf16.mxu0 0
    %98 = vmatmul.mubr.bf16.gmra.mrb[0].mxu0 %v54
    %v99 = vpop.f32.mrb[0].mxu0
    %v100 = vadd.f32 0.0, %v99
    %v101 = vpop.f32.mrb[0].mxu0
    %v102 = vpop.f32.mrb[0].mxu0
    %v103 = vadd.f32 0.0, %v102
    %v104 = vpop.f32.mrb[0].mxu0
    %105 = vmatprep.mubr.bf16.mxu0 0
    %106 = vmatmul.mubr.bf16.gmra.mrb[0].mxu0 %v57
    %v107 = vpop.f32.mrb[0].mxu0
    %v108 = vadd.f32 0.0, %v107
    %v109 = vpop.f32.mrb[0].mxu0
    %v110 = vpop.f32.mrb[0].mxu0
    %v111 = vadd.f32 0.0, %v110
    %v112 = vpop.f32.mrb[0].mxu0
    %113 = vmatprep.mubr.bf16.mxu0 0
    %114 = vmatmul.mubr.bf16.gmra.mrb[0].mxu0 %v60
    %v115 = vpop.f32.mrb[0].mxu0
    %v116 = vadd.f32 0.0, %v115
    %v117 = vpop.f32.mrb[0].mxu0
    %v118 = vpop.f32.mrb[0].mxu0
    %v119 = vadd.f32 0.0, %v118
    %v120 = vpop.f32.mrb[0].mxu0
    %121 = vmatprep.mubr.bf16.mxu0 0
    %122 = vmatmul.mubr.bf16.gmra.mrb[0].mxu0 %v63
    %v123 = vpop.f32.mrb[0].mxu0
    %v124 = vadd.f32 0.0, %v123
    %v125 = vpop.f32.mrb[0].mxu0
    %v126 = vpop.f32.mrb[0].mxu0
    %v127 = vpop.f32.mrb[0].mxu0
    %128 = vdwg.mxu0
    %v129 = vmax.f32 %v100, 0.0
    %v130 = vmax.f32 %v103, 0.0
    %v131 = vmax.f32 %v108, 0.0
    %v132 = vmax.f32 %v111, 0.0
    %v133 = vmax.f32 %v116, 0.0
    %v134 = vmax.f32 %v119, 0.0
    %v135 = vmax.f32 %v124, 0.0
    %v136 = vld [vmem:[%s2] sm:$0xf]
    %v137 = vld [vmem:[%s2 + $0x4] sm:$0xf]
    %v138 = vld [vmem:[%s2 + $0x8] sm:$0xf]
    %v139 = vld [vmem:[%s2 + $0xc] sm:$0x3]
    %v140 = vpack.c.bf16 %v130, %v129
    %v141 = vpack.c.bf16 %v132, %v131
    %v142 = vpack.c.bf16 %v134, %v133
    %v143 = vpack.c.bf16 %v135, %v135
    %v148 = vunpack.c.l.b16 %v136
    %v149 = vunpack.c.l.b16 %v137
    %v150 = vunpack.c.l.b16 %v138
    %v151 = vunpack.c.l.b16 %v139
    %v152 = vpack.c.b16 %v149, %v148
    %v153 = vpack.c.b16 %v151, %v150
    %vm154 = vcmask 449536
    %v156 = vsel %vm154, %v152, 0
    %v159 = vsel %vm154, %v153, 0
    %vm161 = vcmask 1042432
    %vm162 = vcmask 1043456
    %v163 = vsel %vm161, 4294967295, 65535
    %v164 = vsel %vm162, %v163, 0
    %v166 = vand.u32 %v143, %v164
    %168 = vmatprep.subr.bf16.mxu0 0
    %169 = vmatpush1.bf16.msra.mxu0 %v140
    %170 = vmatprep.subr.bf16.mxu0 0
    %171 = vmatpush1.bf16.msra.mxu0 %v141
    %172 = vmatprep.subr.bf16.mxu0 0
    %173 = vmatpush1.bf16.msra.mxu0 %v142
    %174 = vmatprep.subr.bf16.mxu0 0
    %175 = vmatpush1.bf16.msra.mxu0 %v166
    %176 = vmatprep.subr.bf16.mxu0 0
    %177 = vmatpush1.bf16.msra.mxu0 0
    %178 = vmatprep.subr.bf16.mxu0 0
    %179 = vmatpush1.bf16.msra.mxu0 0
    %180 = vmatprep.subr.bf16.mxu0 0
    %181 = vmatpush1.bf16.msra.mxu0 0
    %182 = vmatprep.subr.bf16.mxu0 0
    %183 = vmatpush1.bf16.msra.mxu0 0
    %184 = vmatprep.subr.bf16.mxu0 0
    %185 = vmatpush1.bf16.msra.mxu0 0
    %186 = vmatprep.subr.bf16.mxu0 0
    %187 = vmatpush1.bf16.msra.mxu0 0
    %188 = vmatprep.subr.bf16.mxu0 0
    %189 = vmatpush1.bf16.msra.mxu0 0
    %190 = vmatprep.subr.bf16.mxu0 0
    %191 = vmatpush1.bf16.msra.mxu0 0
    %192 = vmatprep.subr.bf16.mxu0 0
    %193 = vmatpush1.bf16.msra.mxu0 0
    %194 = vmatprep.subr.bf16.mxu0 0
    %195 = vmatpush1.bf16.msra.mxu0 0
    %196 = vmatprep.subr.bf16.mxu0 0
    %197 = vmatpush1.bf16.msra.mxu0 0
    %198 = vmatprep.subr.bf16.mxu0 0
    %199 = vmatpush1.bf16.msra.mxu0 0
    %200 = vmatprep.mubr.bf16.mxu0 0
    %201 = vmatmul.mubr.bf16.gmra.mrb[0].mxu0 %v156
    %v202 = vpop.f32.mrb[0].mxu0
    %v203 = vadd.f32 0.0, %v202
    %v204 = vpop.f32.mrb[0].mxu0
    %v205 = vpop.f32.mrb[0].mxu0
    %v206 = vadd.f32 0.0, %v205
    %v207 = vpop.f32.mrb[0].mxu0
    %208 = vmatprep.mubr.bf16.mxu0 0
    %209 = vmatmul.mubr.bf16.gmra.mrb[0].mxu0 %v159
    %v210 = vpop.f32.mrb[0].mxu0
    %v211 = vadd.f32 0.0, %v210
    %v212 = vpop.f32.mrb[0].mxu0
    %v213 = vpop.f32.mrb[0].mxu0
    %v214 = vadd.f32 0.0, %v213
    %v215 = vpop.f32.mrb[0].mxu0
    %216 = vdwg.mxu0
    %v217 = vmax.f32 %v203, 0.0
    %v218 = vmax.f32 %v206, 0.0
    %v219 = vmax.f32 %v211, 0.0
    %v220 = vmax.f32 %v214, 0.0
    %v221 = vld [vmem:[%s3] sm:$0x7]
    %v222 = vpack.c.bf16 %v218, %v217
    %v223 = vpack.c.bf16 %v220, %v219
    %vm224 = vcmask 228352
    %v226 = vsel %vm224, %v221, 0
    %vm228 = vcmask 1045504
    %v230 = vsel %vm228, %v223, 0
    %232 = vmatprep.subr.bf16.mxu0 0
    %233 = vmatpush1.bf16.msra.mxu0 %v222
    %234 = vmatprep.subr.bf16.mxu0 0
    %235 = vmatpush1.bf16.msra.mxu0 %v230
    %236 = vmatprep.subr.bf16.mxu0 0
    %237 = vmatpush1.bf16.msra.mxu0 0
    %238 = vmatprep.subr.bf16.mxu0 0
    %239 = vmatpush1.bf16.msra.mxu0 0
    %240 = vmatprep.subr.bf16.mxu0 0
    %241 = vmatpush1.bf16.msra.mxu0 0
    %242 = vmatprep.subr.bf16.mxu0 0
    %243 = vmatpush1.bf16.msra.mxu0 0
    %244 = vmatprep.subr.bf16.mxu0 0
    %245 = vmatpush1.bf16.msra.mxu0 0
    %246 = vmatprep.subr.bf16.mxu0 0
    %247 = vmatpush1.bf16.msra.mxu0 0
    %248 = vmatprep.subr.bf16.mxu0 0
    %249 = vmatpush1.bf16.msra.mxu0 0
    %250 = vmatprep.subr.bf16.mxu0 0
    %251 = vmatpush1.bf16.msra.mxu0 0
    %252 = vmatprep.subr.bf16.mxu0 0
    %253 = vmatpush1.bf16.msra.mxu0 0
    %254 = vmatprep.subr.bf16.mxu0 0
    %255 = vmatpush1.bf16.msra.mxu0 0
    %256 = vmatprep.subr.bf16.mxu0 0
    %257 = vmatpush1.bf16.msra.mxu0 0
    %258 = vmatprep.subr.bf16.mxu0 0
    %259 = vmatpush1.bf16.msra.mxu0 0
    %260 = vmatprep.subr.bf16.mxu0 0
    %261 = vmatpush1.bf16.msra.mxu0 0
    %262 = vmatprep.subr.bf16.mxu0 0
    %263 = vmatpush1.bf16.msra.mxu0 0
    %264 = vmatprep.mubr.bf16.mxu0 0
    %265 = vmatmul.mubr.bf16.gmra.mrb[0].mxu0 %v226
    %v266 = vpop.f32.mrb[0].mxu0
    %v267 = vadd.f32 0.0, %v266
    %v268 = vpop.f32.mrb[0].mxu0
    %v269 = vpop.f32.mrb[0].mxu0
    %v270 = vpop.f32.mrb[0].mxu0
    %271 = vdwg.mxu0
    %vm272 = vcmask 1044480
    %v273 = vsel %vm272, %v267, -inf
    %v274 = vrot.slane %v273, 4
    %v275 = vmax.f32 %v273, %v274
    %v276 = vrot.slane %v275, 2
    %v277 = vmax.f32 %v275, %v276
    %v278 = vrot.slane %v277, 1
    %v279 = vmax.f32 %v277, %v278
    %v280 = vsub.f32 %v267, %v279
    %v281 = vmul.f32 %v280, 1.442695
    %v282 = vpow.pop %v281
    %v283 = vsel %vm272, %v282, 0.0
    %v284 = vrot.slane %v283, 4
    %v285 = vadd.f32 %v283, %v284
    %v286 = vrot.slane %v285, 2
    %v287 = vadd.f32 %v285, %v286
    %v288 = vrot.slane %v287, 1
    %v289 = vadd.f32 %v287, %v288
    %v290 = vrcp.pop %v289
    %v291 = vmul.f32 %v282, %v290
    %292 = vst [vmem:[#allocation2] sm:$0x1f] %v291
    // Predicated region
    $region18: #{tpu_custom_call.1} parent=1 // pred_check
      _
    $region19: #{tpu_custom_call.1} parent=1 // pred_check_branch
      %294 = sbr.rel (0) target = $region21
    $region20: #{tpu_custom_call.1} parent=1 // pred_region
      %s296 = ssub.s32 128, 128
      %297 = vsyncadd [#allocation3], %s296
      %s299 = sshll.u32 [#allocation2], 4
      %s300 = int_to_ptr.vmem [resolvable:$true] %s299
      %302 = dma.vmem_to_hbm [thread:$0]  %s300, 128, %s4, [#allocation3]
    $region21: #{tpu_custom_call.1} parent=1 // pred_fallthru
      _
    // Predicated region
    $region22: #{tpu_custom_call.1} parent=1 // pred_check
      _
    $region23: #{tpu_custom_call.1} parent=1 // pred_check_branch
      %304 = sbr.rel (0) target = $region25
    $region24: #{tpu_custom_call.1} parent=1 // pred_region
      %305 = dma.done [#allocation3], 128
    $region25: #{tpu_custom_call.1} parent=1 // pred_fallthru
      _
    %306 = vsyncpa [#allocation3], 1

</llo_original>
